<compile_context>
chip_gen: v7x
topology: tpu7x:2x2x1
jax: 0.10.0
libtpu: 0.0.40
codegen_flags: <defaults>
</compile_context>

<pallas_src>
import jax
import jax.numpy as jnp
from jax.experimental import pallas as pl
from jax.experimental.pallas import tpu as pltpu

AMPLIFIER = 100.0


def _round_down(x, m):
    return (x // m) * m


def mask_kernel(params_ref, v_ref, o_ref):
    # params_ref (SMEM, f32[3]): [center, coeff, threshold]
    center = params_ref[0]
    coeff = params_ref[1]          # -0.5 / (std * amplifier)^2, folded on host
    thr = params_ref[2]
    v = v_ref[...].astype(jnp.float32)   # compute in f32 even for 16-bit inputs
    diff = v - center
    p = jnp.exp(coeff * (diff * diff))
    o_ref[...] = jnp.where(p >= thr, p, 0.0).astype(o_ref.dtype)


def mask_forward(value, mean, std, threshold, *, tile_m=512, tile_n=1024,
                 amplifier=AMPLIFIER):
    """Pallas TPU implementation of Mask.forward (elementwise Gaussian mask)."""
    value = jnp.asarray(value)
    orig_shape = value.shape
    in_dtype = value.dtype
    # Output follows the input's floating dtype; integer depth maps produce f32.
    out_dtype = in_dtype if jnp.issubdtype(in_dtype, jnp.floating) else jnp.float32

    # Present a 2-D view (row-major reshape is metadata-only for the common case).
    if value.ndim == 2:
        v2 = value
    elif value.ndim > 2:
        v2 = value.reshape(-1, orig_shape[-1])
    else:
        v2 = value.reshape(1, -1)
    # TODO(synk): for inputs whose last dim is small / not 128-aligned, a lane-dense
    # re-flatten (last dim a large multiple of 128) would avoid masked partial stores.
    M, N = v2.shape

    # Block sizes: each of the last two dims must be (8 / 128)-divisible or equal the
    # full array extent. Ragged M/N is handled by Pallas' partial edge blocks (masked
    # OOB writes), so no host-side padding is needed.
    if M <= 8:
        tm = M
    elif M < 16:
        tm = 8
    else:
        # Cap at ~M/2 so the grid has >=2 row blocks (keeps both v7x TensorCores busy;
        # costs one extra ~0.35us grid step on single-core chips).
        tm = min(tile_m, max(8, _round_down(M // 2, 8)))
    if N < 128 or N % 128 != 0:
        tn = N
    else:
        tn = min(tile_n, N)

    grid = (pl.cdiv(M, tm), pl.cdiv(N, tn))

    # Scalars folded on the wrapper side; works with traced (jit) parameters since no
    # Python float() is involved. NOTE: folding -0.5/(std*100)^2 into one coefficient
    # can flip the threshold gate by ~1 ulp for p extremely close to `threshold`.
    mean = jnp.asarray(mean, jnp.float32)
    std = jnp.asarray(std, jnp.float32)
    threshold = jnp.asarray(threshold, jnp.float32)
    center = mean * jnp.float32(amplifier)
    coeff = jnp.float32(-0.5) / jnp.square(std * jnp.float32(amplifier))
    params = jnp.stack([center, coeff, threshold]).astype(jnp.float32)

    elems = M * N
    cost = pl.CostEstimate(
        flops=5 * elems,
        transcendentals=elems,
        bytes_accessed=elems * (v2.dtype.itemsize + jnp.dtype(out_dtype).itemsize),
    )

    out = pl.pallas_call(
        mask_kernel,
        out_shape=jax.ShapeDtypeStruct((M, N), out_dtype),
        grid=grid,
        in_specs=[
            pl.BlockSpec(memory_space=pltpu.MemorySpace.SMEM),   # [center, coeff, thr]
            pl.BlockSpec((tm, tn), lambda i, j: (i, j)),
        ],
        out_specs=pl.BlockSpec((tm, tn), lambda i, j: (i, j)),
        compiler_params=pltpu.CompilerParams(
            dimension_semantics=("parallel", "parallel")
        ),
        cost_estimate=cost,
    )(params, v2)

    return out.reshape(orig_shape)


def mask_forward_ref(value, mean, std, threshold, amplifier=AMPLIFIER):
    v = jnp.asarray(value, jnp.float32)
    p = jnp.exp(-0.5 * ((v - mean * amplifier) ** 2 / (std * amplifier) ** 2))
    return jnp.where(p >= threshold, p, 0.0)


if __name__ == "__main__":
    # Deterministic parameter init (mirrors Mask.__init__(mean, std, threshold)).
    mean = 1.0
    std = 0.5
    threshold = 0.1

    key = jax.random.PRNGKey(0)
    k1, k2 = jax.random.split(key)

    # --- f32, ragged rows (exercises partial edge blocks, no pad/slice path) ---
    M, N = 250, 384
    value = (mean * AMPLIFIER
             + 3.0 * std * AMPLIFIER * jax.random.normal(k1, (M, N), dtype=jnp.float32))

    out = mask_forward(value, mean, std, threshold)
    out = jax.block_until_ready(out)
    assert out.shape == value.shape and out.dtype == jnp.float32

    ref = mask_forward_ref(value, mean, std, threshold)
    # Ignore elements whose prob sits within float noise of the threshold (the folded
    # -0.5/denom scalar can flip the gate by 1 ulp there).
    p_ref = jnp.exp(-0.5 * ((value - mean * AMPLIFIER) ** 2 / (std * AMPLIFIER) ** 2))
    near_thr = jnp.abs(p_ref - threshold) < 1e-5
    close = jnp.isclose(out, ref, atol=1e-6, rtol=1e-6)
    assert bool(jnp.all(jnp.logical_or(close, near_thr))), "f32 mismatch vs reference"

    # --- bf16 input: native-dtype I/O path (output stays bf16) ---
    Mb, Nb = 64, 256
    value_bf16 = (mean * AMPLIFIER
                  + 3.0 * std * AMPLIFIER
                  * jax.random.normal(k2, (Mb, Nb), dtype=jnp.float32)).astype(jnp.bfloat16)
    out_bf16 = jax.block_until_ready(mask_forward(value_bf16, mean, std, threshold))
    assert out_bf16.shape == value_bf16.shape and out_bf16.dtype == jnp.bfloat16
    ref_bf16 = mask_forward_ref(value_bf16.astype(jnp.float32), mean, std, threshold)
    p_ref_b = jnp.exp(-0.5 * ((value_bf16.astype(jnp.float32) - mean * AMPLIFIER) ** 2
                              / (std * AMPLIFIER) ** 2))
    near_thr_b = jnp.abs(p_ref_b - threshold) < 5e-3
    close_b = jnp.isclose(out_bf16.astype(jnp.float32), ref_bf16, atol=2e-2, rtol=2e-2)
    assert bool(jnp.all(jnp.logical_or(close_b, near_thr_b))), "bf16 mismatch vs reference"

    print("KERNEL_OK")
</pallas_src>

<mosaic_0001>
module attributes {stable_mosaic.version = 11 : i64} {
  func.func @mask_kernel(%arg0: i32, %arg1: i32, %arg2: memref<3xf32, #tpu.memory_space<smem>>, %arg3: memref<120x384xf32, #tpu.memory_space<vmem>>, %arg4: memref<120x384xf32, #tpu.memory_space<vmem>>) attributes {dimension_semantics = [#tpu.dimension_semantics<parallel>, #tpu.dimension_semantics<parallel>], iteration_bounds = array<i64: 3, 1>, scalar_prefetch = 0 : i64, scratch_operands = 0 : i64, tpu.core_type = #tpu.core_type<tc>, window_params = [{transform_indices = @transform_0, window_bounds = array<i64: 3>}, {transform_indices = @transform_1, window_bounds = array<i64: 120, 384>}, {transform_indices = @transform_2, window_bounds = array<i64: 120, 384>}]} {
    %c0 = arith.constant 0 : index
    %0 = memref.load %arg2[%c0] : memref<3xf32, #tpu.memory_space<smem>>
    %c1 = arith.constant 1 : index
    %1 = memref.load %arg2[%c1] : memref<3xf32, #tpu.memory_space<smem>>
    %c2 = arith.constant 2 : index
    %2 = memref.load %arg2[%c2] : memref<3xf32, #tpu.memory_space<smem>>
    %c0_0 = arith.constant 0 : index
    %c0_1 = arith.constant 0 : index
    %3 = vector.load %arg3[%c0_0, %c0_1] : memref<120x384xf32, #tpu.memory_space<vmem>>, vector<120x384xf32>
    %4 = vector.broadcast %0 : f32 to vector<120x384xf32>
    %5 = arith.subf %3, %4 : vector<120x384xf32>
    %6 = arith.mulf %5, %5 : vector<120x384xf32>
    %7 = vector.broadcast %1 : f32 to vector<120x384xf32>
    %8 = arith.mulf %7, %6 : vector<120x384xf32>
    %9 = math.exp %8 : vector<120x384xf32>
    %10 = vector.broadcast %2 : f32 to vector<120x384xf32>
    %11 = arith.cmpf oge, %9, %10 : vector<120x384xf32>
    %cst = arith.constant 0.000000e+00 : f32
    %12 = vector.broadcast %cst : f32 to vector<120x384xf32>
    %13 = arith.select %11, %9, %12 : vector<120x384xi1>, vector<120x384xf32>
    %c0_2 = arith.constant 0 : index
    %c0_3 = arith.constant 0 : index
    %14 = vector.load %arg4[%c0_2, %c0_3] : memref<120x384xf32, #tpu.memory_space<vmem>>, vector<120x384xf32>
    tpu.vector_store %arg4[%c0_2, %c0_3], %13 {strides = array<i32>} : memref<120x384xf32, #tpu.memory_space<vmem>>, vector<120x384xf32>,
    return
  }
  func.func @transform_0(%arg0: i32, %arg1: i32) -> i32 {
    %c0_i32 = arith.constant 0 : i32
    %c0_i32_0 = arith.constant 0 : i32
    return %c0_i32 : i32
  }
  func.func @transform_1(%arg0: i32, %arg1: i32) -> (i32, i32) {
    %c0_i32 = arith.constant 0 : i32
    return %arg0, %arg1 : i32, i32
  }
  func.func @transform_2(%arg0: i32, %arg1: i32) -> (i32, i32) {
    %c0_i32 = arith.constant 0 : i32
    return %arg0, %arg1 : i32, i32
  }
}

</mosaic_0001>

<llo_original>
// kernel: tpu_custom_call.1
$region0: #{tpu_custom_call.1}
  #allocation0 [shape = 'u32[]', space=smem, size = 0x4, offset = 0x4, fixed_abs, tag = 'smem constant byte address 0x4 - core index']
  #allocation1 [shape = 'u32[144,128]{1,0:T(1,128)}', space=vmem, size = 0x12000, scoped, tag = 'internal scratch']
  %s0 = inlined_call_operand.hbm [shape: f32[3], index: 0, kind: input, shape index: {}]
  %s1 = inlined_call_operand.hbm [shape: f32[250,384], index: 1, kind: input, shape index: {}]
  %s2 = inlined_call_operand.hbm [shape: f32[250,384], index: 2, kind: output, shape index: {}]
  %s3 = sld [smem:[#allocation0]]
  $region49: #{tpu_custom_call.1} parent=0
    _
  %s5 = ssub.s32 1, %s3
  %s6 = scalar_select 0, %s5, %s3
  $region1: #{tpu_custom_call.1} parent=0
    #allocation2 [shape = 'u8[512]{0}', space=smem, size = 0x200, scoped, tag = 'input window, operand 0, single buffered']
    #allocation3 [shape = 's32[2]{0}', space=sflag, size = 0x8, scoped, tag = 'scoped memory for tpu_custom_call.1']
    #allocation4 [shape = 's32[2]{0}', space=sflag, size = 0x8, scoped, tag = 'scoped memory for tpu_custom_call.1']
    #allocation5 [shape = 's32[2]{0}', space=sflag, size = 0x8, scoped, tag = 'scoped memory for tpu_custom_call.1']
    #allocation6 [shape = 'u8[368640]{0}', space=vmem, size = 0x5a000, scoped, tag = 'input window, operand 1']
    #allocation7 [shape = 'u8[368640]{0}', space=vmem, size = 0x5a000, scoped, tag = 'output window, operand 0']
    %7 = vsyncpa [#allocation5], 0
    %8 = vsyncpa [#allocation3], 0
    %s9 = scalar_lea.sflag [#allocation3], 1
    %10 = vsyncpa %s9, 0
    %11 = vsyncpa [#allocation4], 0
    %s12 = scalar_lea.sflag [#allocation4], 1
    %13 = vsyncpa %s12, 0
    loop: start=0, step=1, limit=5
    $region2: #{tpu_custom_call.1} parent=1 // loop_pre_header
      _
    $region3: #{tpu_custom_call.1} parent=1 // loop_header
      %s15 = sphi 0, %s19
      %p16 = scmp.ge.s32.totalorder %s15, 5
      %s22 = sphi 0, %s34
      %s23 = sphi 0, %s30
      %s24 = sphi 0, %s22
      %s25 = sphi 0, %s23
      %s26 = sphi 0, %s24
      %s27 = sphi 0, %s25
      %s35 = sphi 0, %s35
      %s37 = sphi 0, %s35
      %s38 = sphi 0, %s37
      %s52 = sphi 0, %s38
      %s60 = sphi 0, %s62
      %s63 = sphi 0, %s60
      %s64 = sphi 0, %s63
      %s80 = sphi 0, %s64
      %s88 = sphi 0, %s90
      %s91 = sphi 0, %s88
      %s92 = sphi 0, %s91
      %s108 = sphi 0, %s92
    $region4: #{tpu_custom_call.1} parent=1 // loop_header_branch
      %18 = sbr.rel (%p16) target = $region8
    $region5: #{tpu_custom_call.1} parent=1 // loop_body
      %s20 = ssub.s32 %s15, 1
      %s21 = ssub.s32 %s15, 2
      %s28 = sadd.s32 1, %s23
      %p29 = scmp.ge.s32.totalorder %s28, 1
      %s30 = scalar_select %p29, 0, %s28
      %s31 = sadd.s32 1, %s22
      %s32 = scalar_select %p29, %s31, %s22
      %p33 = scmp.ge.s32.totalorder %s32, 3
      %s34 = scalar_select %p33, 0, %s32
      %s36 = sadd.s32 %s35, 1
      %p39 = scmp.eq.s32.totalorder %s15, 2
      %p40 = scmp.ne.s32.totalorder %s35, %s37
      %p41 = scmp.eq.s32.totalorder %s15, 0
      %p42 = por %p40, %p41
      %p43 = scmp.ne.s32.totalorder %s35, %s37
      %p44 = scmp.eq.s32.totalorder %s20, 2
      %p45 = por %p43, %p44
      %p46 = scmp.ne.s32.totalorder %s37, %s38
      %p47 = scmp.eq.s32.totalorder %s20, 0
      %p48 = por %p46, %p47
      %p49 = scmp.ne.s32.totalorder %s37, %s38
      %p50 = scmp.eq.s32.totalorder %s21, 2
      %p51 = por %p49, %p50
      %p53 = scmp.ne.s32.totalorder %s38, %s52
      %p54 = scmp.eq.s32.totalorder %s21, 0
      %p55 = por %p53, %p54
      %s56 = ssub.s32 %s22, %s34
      %s57 = ssub.s32 %s23, %s30
      %s58 = sor.u32 %s56, %s57
      %p59 = scmp.eq.s32.totalorder %s58, 0
      %s61 = sadd.s32 %s60, 1
      %s62 = scalar_select %p59, %s60, %s61
      %p65 = pneg %p59
      %p66 = scmp.eq.s32.totalorder %s15, 2
      %p67 = por %p65, %p66
      %p68 = scmp.ne.s32.totalorder %s60, %s63
      %p69 = scmp.eq.s32.totalorder %s15, 0
      %p70 = por %p68, %p69
      %p71 = scmp.ne.s32.totalorder %s60, %s63
      %p72 = scmp.eq.s32.totalorder %s20, 2
      %p73 = por %p71, %p72
      %p74 = scmp.ne.s32.totalorder %s63, %s64
      %p75 = scmp.eq.s32.totalorder %s20, 0
      %p76 = por %p74, %p75
      %p77 = scmp.ne.s32.totalorder %s63, %s64
      %p78 = scmp.eq.s32.totalorder %s21, 2
      %p79 = por %p77, %p78
      %p81 = scmp.ne.s32.totalorder %s64, %s80
      %p82 = scmp.eq.s32.totalorder %s21, 0
      %p83 = por %p81, %p82
      %s84 = ssub.s32 %s22, %s34
      %s85 = ssub.s32 %s23, %s30
      %s86 = sor.u32 %s84, %s85
      %p87 = scmp.eq.s32.totalorder %s86, 0
      %s89 = sadd.s32 %s88, 1
      %s90 = scalar_select %p87, %s88, %s89
      %p93 = pneg %p87
      %p94 = scmp.eq.s32.totalorder %s15, 2
      %p95 = por %p93, %p94
      %p96 = scmp.ne.s32.totalorder %s88, %s91
      %p97 = scmp.eq.s32.totalorder %s15, 0
      %p98 = por %p96, %p97
      %p99 = scmp.ne.s32.totalorder %s88, %s91
      %p100 = scmp.eq.s32.totalorder %s20, 2
      %p101 = por %p99, %p100
      %p102 = scmp.ne.s32.totalorder %s91, %s92
      %p103 = scmp.eq.s32.totalorder %s20, 0
      %p104 = por %p102, %p103
      %p105 = scmp.ne.s32.totalorder %s91, %s92
      %p106 = scmp.eq.s32.totalorder %s21, 2
      %p107 = por %p105, %p106
      %p109 = scmp.ne.s32.totalorder %s92, %s108
      %p110 = scmp.eq.s32.totalorder %s21, 0
      %p111 = por %p109, %p110
      %p112 = scmp.le.s32.totalorder 1, %s15
      %p113 = scmp.lt.s32.totalorder %s15, 4
      %p114 = pnand %p112, %p113
      %p115 = pneg %p114
      // Predicated region
      $region9: #{tpu_custom_call.1} parent=5 // pred_check
        _
      $region10: #{tpu_custom_call.1} parent=5 // pred_check_branch
        %117 = sbr.rel (%p114) target = $region12
      $region11: #{tpu_custom_call.1} parent=5 // pred_region
        %s118 = ssub.s32 %s15, 1
        // Predicated region
        $region13: #{tpu_custom_call.1} parent=11 // pred_check
          %p119 = pneg %p48
        $region14: #{tpu_custom_call.1} parent=11 // pred_check_branch
          %121 = sbr.rel (%p119) target = $region16
        $region15: #{tpu_custom_call.1} parent=11 // pred_region
          %s123 = ssub.s32 16, 16
          %124 = vsyncadd [#allocation5], %s123
          %127 = dma.hbm_to_smem %s0, 16, [#allocation2], [#allocation5]
        $region16: #{tpu_custom_call.1} parent=11 // pred_fallthru
          _
      $region12: #{tpu_custom_call.1} parent=5 // pred_fallthru
        _
      %p128 = scmp.lt.s32.totalorder %s15, 3
      // Predicated region
      $region17: #{tpu_custom_call.1} parent=5 // pred_check
        %p129 = pneg %p128
      $region18: #{tpu_custom_call.1} parent=5 // pred_check_branch
        %131 = sbr.rel (%p129) target = $region20
      $region19: #{tpu_custom_call.1} parent=5 // pred_region
        // Predicated region
        $region21: #{tpu_custom_call.1} parent=19 // pred_check
          %p132 = pneg %p70
        $region22: #{tpu_custom_call.1} parent=19 // pred_check_branch
          %134 = sbr.rel (%p132) target = $region24
        $region23: #{tpu_custom_call.1} parent=19 // pred_region
          %s135 = sand.u32 %s60, 1
          %s136 = scalar_lea.sflag [#allocation3], %s135
          %s137 = sand.u32 %s60, 1
          %s138 = smul.addr %s137, 360
          %s139 = scalar_lea.vmem [#allocation6], %s138
          %s140 = smul.u32 15, %s22
          %s141 = smul.u32 3, %s23
          %s142 = ssub.s32 32, %s140
          %p143 = scmp.lt.s32.totalorder %s142, 15
          %s144 = scalar_select %p143, %s142, 15
          %s145 = smul.u32 128, %s144
          %s146 = smul.u32 %s145, 3
          %s148 = ssub.s32 5760, %s146
          %149 = vsyncadd %s136, %s148
          %p150 = scmp.ne.s32.totalorder 0, %s146
          %s151 = smul.addr %s140, 3
          %s152 = sadd.s32 %s141, %s151
          %s153 = smul.addr %s152, 128
          %s154 = scalar_lea.hbm %s1, %s153
          %s155 = smul.u32 24, %s144
          %s156 = sshll.u32 %s139, 4
          %s157 = int_to_ptr.vmem [resolvable:$true] %s156
          %s158 = sshll.u32 %s155, 4
          %162 = dma.hbm_to_vmem [thread:$0]  (%p150), %s154, %s158, %s157, %s136, 384, 384, 24
        $region24: #{tpu_custom_call.1} parent=19 // pred_fallthru
          _
      $region20: #{tpu_custom_call.1} parent=5 // pred_fallthru
        _
      %p163 = scmp.le.s32.totalorder 1, %s15
      %p164 = scmp.lt.s32.totalorder %s15, 4
      %p165 = pnand %p163, %p164
      %p166 = pneg %p165
      // Predicated region
      $region25: #{tpu_custom_call.1} parent=5 // pred_check
        _
      $region26: #{tpu_custom_call.1} parent=5 // pred_check_branch
        %168 = sbr.rel (%p165) target = $region28
      $region27: #{tpu_custom_call.1} parent=5 // pred_region
        %s169 = ssub.s32 %s15, 1
        // Predicated region
        $region29: #{tpu_custom_call.1} parent=27 // pred_check
          %p170 = pneg %p48
        $region30: #{tpu_custom_call.1} parent=27 // pred_check_branch
          %172 = sbr.rel (%p170) target = $region32
        $region31: #{tpu_custom_call.1} parent=27 // pred_region
          %173 = dma.done [#allocation5], 16
        $region32: #{tpu_custom_call.1} parent=27 // pred_fallthru
          _
        %s174 = sand.u32 %s63, 1
        %s175 = scalar_lea.sflag [#allocation3], %s174
        %s176 = sand.u32 %s63, 1
        %s177 = smul.addr %s176, 360
        %s178 = scalar_lea.vmem [#allocation6], %s177
        // Predicated region
        $region33: #{tpu_custom_call.1} parent=27 // pred_check
          %p179 = pneg %p76
        $region34: #{tpu_custom_call.1} parent=27 // pred_check_branch
          %181 = sbr.rel (%p179) target = $region36
        $region35: #{tpu_custom_call.1} parent=27 // pred_region
          %182 = dma.done %s175, 5760
        $region36: #{tpu_custom_call.1} parent=27 // pred_fallthru
          _
        %183 = sfence
        %p184 = pneg %p48
        %p185 = pneg %p45
        %s186 = sand.u32 %s63, 1
        %s187 = scalar_lea.sflag [#allocation3], %s186
        %s188 = sand.u32 %s63, 1
        %s189 = smul.addr %s188, 360
        %s190 = scalar_lea.vmem [#allocation6], %s189
        %p191 = pneg %p76
        %p192 = pneg %p73
        %p193 = pneg %p104
        %p194 = pneg %p101
        %s195 = sand.u32 %s91, 1
        %s196 = scalar_lea.sflag [#allocation4], %s195
        %s197 = sand.u32 %s91, 1
        %s198 = smul.addr %s197, 360
        %s199 = scalar_lea.vmem [#allocation7], %s198
        %s200 = smul.u32 15, %s24
        %s201 = smul.u32 3, %s25
        %s202 = ssub.s32 32, %s200
        %p203 = scmp.lt.s32.totalorder %s202, 15
        %s204 = scalar_select %p203, %s202, 15
        %s205 = smul.u32 128, %s204
        %s206 = smul.u32 %s205, 3
        %s207 = smul.u32 15, %s24
        %s208 = smul.u32 3, %s25
        %s209 = ssub.s32 32, %s207
        %p210 = scmp.lt.s32.totalorder %s209, 15
        %s211 = scalar_select %p210, %s209, 15
        %s212 = smul.u32 128, %s211
        %s213 = smul.u32 %s212, 3
        %s214 = sld [smem:[#allocation2]]
        %s215 = sld [smem:[#allocation2 + $0x1]]
        %s216 = sld [smem:[#allocation2 + $0x2]]
        %v217 = vld [vmem:[%s178] sm:$0xff]
        %v218 = vld [vmem:[%s178 + $0x8] sm:$0xff]
        %v219 = vld [vmem:[%s178 + $0x10] sm:$0xff]
        %v220 = vld [vmem:[%s178 + $0x18] sm:$0xff]
        %v221 = vld [vmem:[%s178 + $0x20] sm:$0xff]
        %v222 = vld [vmem:[%s178 + $0x28] sm:$0xff]
        %v223 = vld [vmem:[%s178 + $0x30] sm:$0xff]
        %v224 = vld [vmem:[%s178 + $0x38] sm:$0xff]
        %v225 = vld [vmem:[%s178 + $0x40] sm:$0xff]
        %v226 = vld [vmem:[%s178 + $0x48] sm:$0xff]
        %v227 = vld [vmem:[%s178 + $0x50] sm:$0xff]
        %v228 = vld [vmem:[%s178 + $0x58] sm:$0xff]
        %v229 = vld [vmem:[%s178 + $0x60] sm:$0xff]
        %v230 = vld [vmem:[%s178 + $0x68] sm:$0xff]
        %v231 = vld [vmem:[%s178 + $0x70] sm:$0xff]
        %v232 = vld [vmem:[%s178 + $0x78] sm:$0xff]
        %v233 = vld [vmem:[%s178 + $0x80] sm:$0xff]
        %v234 = vld [vmem:[%s178 + $0x88] sm:$0xff]
        %v235 = vld [vmem:[%s178 + $0x90] sm:$0xff]
        %v236 = vld [vmem:[%s178 + $0x98] sm:$0xff]
        %v237 = vld [vmem:[%s178 + $0xa0] sm:$0xff]
        %v238 = vld [vmem:[%s178 + $0xa8] sm:$0xff]
        %v239 = vld [vmem:[%s178 + $0xb0] sm:$0xff]
        %v240 = vld [vmem:[%s178 + $0xb8] sm:$0xff]
        %v241 = vld [vmem:[%s178 + $0xc0] sm:$0xff]
        %v242 = vld [vmem:[%s178 + $0xc8] sm:$0xff]
        %v243 = vld [vmem:[%s178 + $0xd0] sm:$0xff]
        %v244 = vld [vmem:[%s178 + $0xd8] sm:$0xff]
        %v245 = vld [vmem:[%s178 + $0xe0] sm:$0xff]
        %v246 = vld [vmem:[%s178 + $0xe8] sm:$0xff]
        %v247 = vld [vmem:[%s178 + $0xf0] sm:$0xff]
        %v248 = vld [vmem:[%s178 + $0xf8] sm:$0xff]
        %v249 = vld [vmem:[%s178 + $0x100] sm:$0xff]
        %v250 = vld [vmem:[%s178 + $0x108] sm:$0xff]
        %v251 = vld [vmem:[%s178 + $0x110] sm:$0xff]
        %v252 = vld [vmem:[%s178 + $0x118] sm:$0xff]
        %v253 = vld [vmem:[%s178 + $0x120] sm:$0xff]
        %v254 = vld [vmem:[%s178 + $0x128] sm:$0xff]
        %v255 = vld [vmem:[%s178 + $0x130] sm:$0xff]
        %v256 = vld [vmem:[%s178 + $0x138] sm:$0xff]
        %v257 = vld [vmem:[%s178 + $0x140] sm:$0xff]
        %v258 = vld [vmem:[%s178 + $0x148] sm:$0xff]
        %v259 = vld [vmem:[%s178 + $0x150] sm:$0xff]
        %v260 = vld [vmem:[%s178 + $0x158] sm:$0xff]
        %v261 = vld [vmem:[%s178 + $0x160] sm:$0xff]
        %v262 = vstv %s214
        %v263 = vsub.f32 %v217, %v262
        %v264 = vsub.f32 %v218, %v262
        %v265 = vsub.f32 %v219, %v262
        %v266 = vsub.f32 %v220, %v262
        %v267 = vsub.f32 %v221, %v262
        %v268 = vsub.f32 %v222, %v262
        %v269 = vsub.f32 %v223, %v262
        %v270 = vsub.f32 %v224, %v262
        %v271 = vsub.f32 %v225, %v262
        %v272 = vsub.f32 %v226, %v262
        %v273 = vsub.f32 %v227, %v262
        %v274 = vsub.f32 %v228, %v262
        %v275 = vsub.f32 %v229, %v262
        %v276 = vsub.f32 %v230, %v262
        %v277 = vsub.f32 %v231, %v262
        %v278 = vsub.f32 %v232, %v262
        %v279 = vsub.f32 %v233, %v262
        %v280 = vsub.f32 %v234, %v262
        %v281 = vsub.f32 %v235, %v262
        %v282 = vsub.f32 %v236, %v262
        %v283 = vsub.f32 %v237, %v262
        %v284 = vsub.f32 %v238, %v262
        %v285 = vsub.f32 %v239, %v262
        %v286 = vsub.f32 %v240, %v262
        %v287 = vsub.f32 %v241, %v262
        %v288 = vsub.f32 %v242, %v262
        %v289 = vsub.f32 %v243, %v262
        %v290 = vsub.f32 %v244, %v262
        %v291 = vsub.f32 %v245, %v262
        %v292 = vsub.f32 %v246, %v262
        %v293 = vsub.f32 %v247, %v262
        %v294 = vsub.f32 %v248, %v262
        %v295 = vsub.f32 %v249, %v262
        %v296 = vsub.f32 %v250, %v262
        %v297 = vsub.f32 %v251, %v262
        %v298 = vsub.f32 %v252, %v262
        %v299 = vsub.f32 %v253, %v262
        %v300 = vsub.f32 %v254, %v262
        %v301 = vsub.f32 %v255, %v262
        %v302 = vsub.f32 %v256, %v262
        %v303 = vsub.f32 %v257, %v262
        %v304 = vsub.f32 %v258, %v262
        %v305 = vsub.f32 %v259, %v262
        %v306 = vsub.f32 %v260, %v262
        %v307 = vsub.f32 %v261, %v262
        %v308 = vmul.f32 %v263, %v263
        %v309 = vmul.f32 %v264, %v264
        %v310 = vmul.f32 %v265, %v265
        %v311 = vmul.f32 %v266, %v266
        %v312 = vmul.f32 %v267, %v267
        %v313 = vmul.f32 %v268, %v268
        %v314 = vmul.f32 %v269, %v269
        %v315 = vmul.f32 %v270, %v270
        %v316 = vmul.f32 %v271, %v271
        %v317 = vmul.f32 %v272, %v272
        %v318 = vmul.f32 %v273, %v273
        %v319 = vmul.f32 %v274, %v274
        %v320 = vmul.f32 %v275, %v275
        %v321 = vmul.f32 %v276, %v276
        %v322 = vmul.f32 %v277, %v277
        %v323 = vmul.f32 %v278, %v278
        %v324 = vmul.f32 %v279, %v279
        %v325 = vmul.f32 %v280, %v280
        %v326 = vmul.f32 %v281, %v281
        %v327 = vmul.f32 %v282, %v282
        %v328 = vmul.f32 %v283, %v283
        %v329 = vmul.f32 %v284, %v284
        %v330 = vmul.f32 %v285, %v285
        %v331 = vmul.f32 %v286, %v286
        %v332 = vmul.f32 %v287, %v287
        %v333 = vmul.f32 %v288, %v288
        %v334 = vmul.f32 %v289, %v289
        %v335 = vmul.f32 %v290, %v290
        %v336 = vmul.f32 %v291, %v291
        %v337 = vmul.f32 %v292, %v292
        %v338 = vmul.f32 %v293, %v293
        %v339 = vmul.f32 %v294, %v294
        %v340 = vmul.f32 %v295, %v295
        %v341 = vmul.f32 %v296, %v296
        %v342 = vmul.f32 %v297, %v297
        %v343 = vmul.f32 %v298, %v298
        %v344 = vmul.f32 %v299, %v299
        %v345 = vmul.f32 %v300, %v300
        %v346 = vmul.f32 %v301, %v301
        %v347 = vmul.f32 %v302, %v302
        %v348 = vmul.f32 %v303, %v303
        %v349 = vmul.f32 %v304, %v304
        %v350 = vmul.f32 %v305, %v305
        %v351 = vmul.f32 %v306, %v306
        %v352 = vmul.f32 %v307, %v307
        %v353 = vstv %s215
        %v354 = vmul.f32 %v353, %v308
        %v355 = vmul.f32 %v353, %v309
        %v356 = vmul.f32 %v353, %v310
        %v357 = vmul.f32 %v353, %v311
        %v358 = vmul.f32 %v353, %v312
        %v359 = vmul.f32 %v353, %v313
        %v360 = vmul.f32 %v353, %v314
        %v361 = vmul.f32 %v353, %v315
        %v362 = vmul.f32 %v353, %v316
        %v363 = vmul.f32 %v353, %v317
        %v364 = vmul.f32 %v353, %v318
        %v365 = vmul.f32 %v353, %v319
        %v366 = vmul.f32 %v353, %v320
        %v367 = vmul.f32 %v353, %v321
        %v368 = vmul.f32 %v353, %v322
        %v369 = vmul.f32 %v353, %v323
        %v370 = vmul.f32 %v353, %v324
        %v371 = vmul.f32 %v353, %v325
        %v372 = vmul.f32 %v353, %v326
        %v373 = vmul.f32 %v353, %v327
        %v374 = vmul.f32 %v353, %v328
        %v375 = vmul.f32 %v353, %v329
        %v376 = vmul.f32 %v353, %v330
        %v377 = vmul.f32 %v353, %v331
        %v378 = vmul.f32 %v353, %v332
        %v379 = vmul.f32 %v353, %v333
        %v380 = vmul.f32 %v353, %v334
        %v381 = vmul.f32 %v353, %v335
        %v382 = vmul.f32 %v353, %v336
        %v383 = vmul.f32 %v353, %v337
        %v384 = vmul.f32 %v353, %v338
        %v385 = vmul.f32 %v353, %v339
        %v386 = vmul.f32 %v353, %v340
        %v387 = vmul.f32 %v353, %v341
        %v388 = vmul.f32 %v353, %v342
        %v389 = vmul.f32 %v353, %v343
        %v390 = vmul.f32 %v353, %v344
        %v391 = vmul.f32 %v353, %v345
        %v392 = vmul.f32 %v353, %v346
        %v393 = vmul.f32 %v353, %v347
        %v394 = vmul.f32 %v353, %v348
        %v395 = vmul.f32 %v353, %v349
        %v396 = vmul.f32 %v353, %v350
        %v397 = vmul.f32 %v353, %v351
        %v398 = vmul.f32 %v353, %v352
        %v399 = vmul.f32 %v354, 1.442695
        %v400 = vpow.pop %v399
        %v401 = vmul.f32 %v355, 1.442695
        %v402 = vpow.pop %v401
        %v403 = vmul.f32 %v356, 1.442695
        %v404 = vpow.pop %v403
        %v405 = vmul.f32 %v357, 1.442695
        %v406 = vpow.pop %v405
        %v407 = vmul.f32 %v358, 1.442695
        %v408 = vpow.pop %v407
        %v409 = vmul.f32 %v359, 1.442695
        %v410 = vpow.pop %v409
        %v411 = vmul.f32 %v360, 1.442695
        %v412 = vpow.pop %v411
        %v413 = vmul.f32 %v361, 1.442695
        %v414 = vpow.pop %v413
        %v415 = vmul.f32 %v362, 1.442695
        %v416 = vpow.pop %v415
        %v417 = vmul.f32 %v363, 1.442695
        %v418 = vpow.pop %v417
        %v419 = vmul.f32 %v364, 1.442695
        %v420 = vpow.pop %v419
        %v421 = vmul.f32 %v365, 1.442695
        %v422 = vpow.pop %v421
        %v423 = vmul.f32 %v366, 1.442695
        %v424 = vpow.pop %v423
        %v425 = vmul.f32 %v367, 1.442695
        %v426 = vpow.pop %v425
        %v427 = vmul.f32 %v368, 1.442695
        %v428 = vpow.pop %v427
        %v429 = vmul.f32 %v369, 1.442695
        %v430 = vpow.pop %v429
        %v431 = vmul.f32 %v370, 1.442695
        %v432 = vpow.pop %v431
        %v433 = vmul.f32 %v371, 1.442695
        %v434 = vpow.pop %v433
        %v435 = vmul.f32 %v372, 1.442695
        %v436 = vpow.pop %v435
        %v437 = vmul.f32 %v373, 1.442695
        %v438 = vpow.pop %v437
        %v439 = vmul.f32 %v374, 1.442695
        %v440 = vpow.pop %v439
        %v441 = vmul.f32 %v375, 1.442695
        %v442 = vpow.pop %v441
        %v443 = vmul.f32 %v376, 1.442695
        %v444 = vpow.pop %v443
        %v445 = vmul.f32 %v377, 1.442695
        %v446 = vpow.pop %v445
        %v447 = vmul.f32 %v378, 1.442695
        %v448 = vpow.pop %v447
        %v449 = vmul.f32 %v379, 1.442695
        %v450 = vpow.pop %v449
        %v451 = vmul.f32 %v380, 1.442695
        %v452 = vpow.pop %v451
        %v453 = vmul.f32 %v381, 1.442695
        %v454 = vpow.pop %v453
        %v455 = vmul.f32 %v382, 1.442695
        %v456 = vpow.pop %v455
        %v457 = vmul.f32 %v383, 1.442695
        %v458 = vpow.pop %v457
        %v459 = vmul.f32 %v384, 1.442695
        %v460 = vpow.pop %v459
        %v461 = vmul.f32 %v385, 1.442695
        %v462 = vpow.pop %v461
        %v463 = vmul.f32 %v386, 1.442695
        %v464 = vpow.pop %v463
        %v465 = vmul.f32 %v387, 1.442695
        %v466 = vpow.pop %v465
        %v467 = vmul.f32 %v388, 1.442695
        %v468 = vpow.pop %v467
        %v469 = vmul.f32 %v389, 1.442695
        %v470 = vpow.pop %v469
        %v471 = vmul.f32 %v390, 1.442695
        %v472 = vpow.pop %v471
        %v473 = vmul.f32 %v391, 1.442695
        %v474 = vpow.pop %v473
        %v475 = vmul.f32 %v392, 1.442695
        %v476 = vpow.pop %v475
        %v477 = vmul.f32 %v393, 1.442695
        %v478 = vpow.pop %v477
        %v479 = vmul.f32 %v394, 1.442695
        %v480 = vpow.pop %v479
        %v481 = vmul.f32 %v395, 1.442695
        %v482 = vpow.pop %v481
        %v483 = vmul.f32 %v396, 1.442695
        %v484 = vpow.pop %v483
        %v485 = vmul.f32 %v397, 1.442695
        %v486 = vpow.pop %v485
        %v487 = vmul.f32 %v398, 1.442695
        %v488 = vpow.pop %v487
        %v489 = vstv %s216
        %vm490 = vcmp.ge.f32.partialorder %v400, %v489
        %vm491 = vcmp.ge.f32.partialorder %v402, %v489
        %vm492 = vcmp.ge.f32.partialorder %v404, %v489
        %vm493 = vcmp.ge.f32.partialorder %v406, %v489
        %vm494 = vcmp.ge.f32.partialorder %v408, %v489
        %vm495 = vcmp.ge.f32.partialorder %v410, %v489
        %vm496 = vcmp.ge.f32.partialorder %v412, %v489
        %vm497 = vcmp.ge.f32.partialorder %v414, %v489
        %vm498 = vcmp.ge.f32.partialorder %v416, %v489
        %vm499 = vcmp.ge.f32.partialorder %v418, %v489
        %vm500 = vcmp.ge.f32.partialorder %v420, %v489
        %vm501 = vcmp.ge.f32.partialorder %v422, %v489
        %vm502 = vcmp.ge.f32.partialorder %v424, %v489
        %vm503 = vcmp.ge.f32.partialorder %v426, %v489
        %vm504 = vcmp.ge.f32.partialorder %v428, %v489
        %vm505 = vcmp.ge.f32.partialorder %v430, %v489
        %vm506 = vcmp.ge.f32.partialorder %v432, %v489
        %vm507 = vcmp.ge.f32.partialorder %v434, %v489
        %vm508 = vcmp.ge.f32.partialorder %v436, %v489
        %vm509 = vcmp.ge.f32.partialorder %v438, %v489
        %vm510 = vcmp.ge.f32.partialorder %v440, %v489
        %vm511 = vcmp.ge.f32.partialorder %v442, %v489
        %vm512 = vcmp.ge.f32.partialorder %v444, %v489
        %vm513 = vcmp.ge.f32.partialorder %v446, %v489
        %vm514 = vcmp.ge.f32.partialorder %v448, %v489
        %vm515 = vcmp.ge.f32.partialorder %v450, %v489
        %vm516 = vcmp.ge.f32.partialorder %v452, %v489
        %vm517 = vcmp.ge.f32.partialorder %v454, %v489
        %vm518 = vcmp.ge.f32.partialorder %v456, %v489
        %vm519 = vcmp.ge.f32.partialorder %v458, %v489
        %vm520 = vcmp.ge.f32.partialorder %v460, %v489
        %vm521 = vcmp.ge.f32.partialorder %v462, %v489
        %vm522 = vcmp.ge.f32.partialorder %v464, %v489
        %vm523 = vcmp.ge.f32.partialorder %v466, %v489
        %vm524 = vcmp.ge.f32.partialorder %v468, %v489
        %vm525 = vcmp.ge.f32.partialorder %v470, %v489
        %vm526 = vcmp.ge.f32.partialorder %v472, %v489
        %vm527 = vcmp.ge.f32.partialorder %v474, %v489
        %vm528 = vcmp.ge.f32.partialorder %v476, %v489
        %vm529 = vcmp.ge.f32.partialorder %v478, %v489
        %vm530 = vcmp.ge.f32.partialorder %v480, %v489
        %vm531 = vcmp.ge.f32.partialorder %v482, %v489
        %vm532 = vcmp.ge.f32.partialorder %v484, %v489
        %vm533 = vcmp.ge.f32.partialorder %v486, %v489
        %vm534 = vcmp.ge.f32.partialorder %v488, %v489
        %v535 = vsel %vm490, %v400, 0.0
        %v536 = vsel %vm491, %v402, 0.0
        %v537 = vsel %vm492, %v404, 0.0
        %v538 = vsel %vm493, %v406, 0.0
        %v539 = vsel %vm494, %v408, 0.0
        %v540 = vsel %vm495, %v410, 0.0
        %v541 = vsel %vm496, %v412, 0.0
        %v542 = vsel %vm497, %v414, 0.0
        %v543 = vsel %vm498, %v416, 0.0
        %v544 = vsel %vm499, %v418, 0.0
        %v545 = vsel %vm500, %v420, 0.0
        %v546 = vsel %vm501, %v422, 0.0
        %v547 = vsel %vm502, %v424, 0.0
        %v548 = vsel %vm503, %v426, 0.0
        %v549 = vsel %vm504, %v428, 0.0
        %v550 = vsel %vm505, %v430, 0.0
        %v551 = vsel %vm506, %v432, 0.0
        %v552 = vsel %vm507, %v434, 0.0
        %v553 = vsel %vm508, %v436, 0.0
        %v554 = vsel %vm509, %v438, 0.0
        %v555 = vsel %vm510, %v440, 0.0
        %v556 = vsel %vm511, %v442, 0.0
        %v557 = vsel %vm512, %v444, 0.0
        %v558 = vsel %vm513, %v446, 0.0
        %v559 = vsel %vm514, %v448, 0.0
        %v560 = vsel %vm515, %v450, 0.0
        %v561 = vsel %vm516, %v452, 0.0
        %v562 = vsel %vm517, %v454, 0.0
        %v563 = vsel %vm518, %v456, 0.0
        %v564 = vsel %vm519, %v458, 0.0
        %v565 = vsel %vm520, %v460, 0.0
        %v566 = vsel %vm521, %v462, 0.0
        %v567 = vsel %vm522, %v464, 0.0
        %v568 = vsel %vm523, %v466, 0.0
        %v569 = vsel %vm524, %v468, 0.0
        %v570 = vsel %vm525, %v470, 0.0
        %v571 = vsel %vm526, %v472, 0.0
        %v572 = vsel %vm527, %v474, 0.0
        %v573 = vsel %vm528, %v476, 0.0
        %v574 = vsel %vm529, %v478, 0.0
        %v575 = vsel %vm530, %v480, 0.0
        %v576 = vsel %vm531, %v482, 0.0
        %v577 = vsel %vm532, %v484, 0.0
        %v578 = vsel %vm533, %v486, 0.0
        %v579 = vsel %vm534, %v488, 0.0
        %580 = vst [vmem:[%s199] sm:$0xff] %v535
        %581 = vst [vmem:[%s199 + $0x8] sm:$0xff] %v536
        %582 = vst [vmem:[%s199 + $0x10] sm:$0xff] %v537
        %583 = vst [vmem:[%s199 + $0x18] sm:$0xff] %v538
        %584 = vst [vmem:[%s199 + $0x20] sm:$0xff] %v539
        %585 = vst [vmem:[%s199 + $0x28] sm:$0xff] %v540
        %586 = vst [vmem:[%s199 + $0x30] sm:$0xff] %v541
        %587 = vst [vmem:[%s199 + $0x38] sm:$0xff] %v542
        %588 = vst [vmem:[%s199 + $0x40] sm:$0xff] %v543
        %589 = vst [vmem:[%s199 + $0x48] sm:$0xff] %v544
        %590 = vst [vmem:[%s199 + $0x50] sm:$0xff] %v545
        %591 = vst [vmem:[%s199 + $0x58] sm:$0xff] %v546
        %592 = vst [vmem:[%s199 + $0x60] sm:$0xff] %v547
        %593 = vst [vmem:[%s199 + $0x68] sm:$0xff] %v548
        %594 = vst [vmem:[%s199 + $0x70] sm:$0xff] %v549
        %595 = vst [vmem:[%s199 + $0x78] sm:$0xff] %v550
        %596 = vst [vmem:[%s199 + $0x80] sm:$0xff] %v551
        %597 = vst [vmem:[%s199 + $0x88] sm:$0xff] %v552
        %598 = vst [vmem:[%s199 + $0x90] sm:$0xff] %v553
        %599 = vst [vmem:[%s199 + $0x98] sm:$0xff] %v554
        %600 = vst [vmem:[%s199 + $0xa0] sm:$0xff] %v555
        %601 = vst [vmem:[%s199 + $0xa8] sm:$0xff] %v556
        %602 = vst [vmem:[%s199 + $0xb0] sm:$0xff] %v557
        %603 = vst [vmem:[%s199 + $0xb8] sm:$0xff] %v558
        %604 = vst [vmem:[%s199 + $0xc0] sm:$0xff] %v559
        %605 = vst [vmem:[%s199 + $0xc8] sm:$0xff] %v560
        %606 = vst [vmem:[%s199 + $0xd0] sm:$0xff] %v561
        %607 = vst [vmem:[%s199 + $0xd8] sm:$0xff] %v562
        %608 = vst [vmem:[%s199 + $0xe0] sm:$0xff] %v563
        %609 = vst [vmem:[%s199 + $0xe8] sm:$0xff] %v564
        %610 = vst [vmem:[%s199 + $0xf0] sm:$0xff] %v565
        %611 = vst [vmem:[%s199 + $0xf8] sm:$0xff] %v566
        %612 = vst [vmem:[%s199 + $0x100] sm:$0xff] %v567
        %613 = vst [vmem:[%s199 + $0x108] sm:$0xff] %v568
        %614 = vst [vmem:[%s199 + $0x110] sm:$0xff] %v569
        %615 = vst [vmem:[%s199 + $0x118] sm:$0xff] %v570
        %616 = vst [vmem:[%s199 + $0x120] sm:$0xff] %v571
        %617 = vst [vmem:[%s199 + $0x128] sm:$0xff] %v572
        %618 = vst [vmem:[%s199 + $0x130] sm:$0xff] %v573
        %619 = vst [vmem:[%s199 + $0x138] sm:$0xff] %v574
        %620 = vst [vmem:[%s199 + $0x140] sm:$0xff] %v575
        %621 = vst [vmem:[%s199 + $0x148] sm:$0xff] %v576
        %622 = vst [vmem:[%s199 + $0x150] sm:$0xff] %v577
        %623 = vst [vmem:[%s199 + $0x158] sm:$0xff] %v578
        %624 = vst [vmem:[%s199 + $0x160] sm:$0xff] %v579
        %s625 = sand.u32 %s91, 1
        %s626 = scalar_lea.sflag [#allocation4], %s625
        %s627 = sand.u32 %s91, 1
        %s628 = smul.addr %s627, 360
        %s629 = scalar_lea.vmem [#allocation7], %s628
        // Predicated region
        $region37: #{tpu_custom_call.1} parent=27 // pred_check
          %p630 = pneg %p101
        $region38: #{tpu_custom_call.1} parent=27 // pred_check_branch
          %632 = sbr.rel (%p630) target = $region40
        $region39: #{tpu_custom_call.1} parent=27 // pred_region
          %s633 = smul.u32 15, %s24
          %s634 = smul.u32 3, %s25
          %s635 = ssub.s32 32, %s633
          %p636 = scmp.lt.s32.totalorder %s635, 15
          %s637 = scalar_select %p636, %s635, 15
          %s638 = smul.u32 128, %s637
          %s639 = smul.u32 %s638, 3
          %s641 = ssub.s32 5760, %s639
          %642 = vsyncadd %s626, %s641
          %p643 = scmp.ne.s32.totalorder 0, %s639
          %s644 = smul.addr %s633, 3
          %s645 = sadd.s32 %s634, %s644
          %s646 = smul.addr %s645, 128
          %s647 = scalar_lea.hbm %s2, %s646
          %s648 = smul.u32 24, %s637
          %s649 = sshll.u32 %s629, 4
          %s650 = int_to_ptr.vmem [resolvable:$true] %s649
          %s651 = sshll.u32 %s648, 4
          %655 = dma.vmem_to_hbm [thread:$0]  (%p643), %s650, %s651, %s647, %s626, 384, 384, 24
        $region40: #{tpu_custom_call.1} parent=27 // pred_fallthru
          _
      $region28: #{tpu_custom_call.1} parent=5 // pred_fallthru
        _
      %p656 = scmp.le.s32.totalorder 2, %s15
      // Predicated region
      $region41: #{tpu_custom_call.1} parent=5 // pred_check
        %p657 = pneg %p656
      $region42: #{tpu_custom_call.1} parent=5 // pred_check_branch
        %659 = sbr.rel (%p657) target = $region44
      $region43: #{tpu_custom_call.1} parent=5 // pred_region
        %s660 = ssub.s32 %s15, 2
        // Predicated region
        $region45: #{tpu_custom_call.1} parent=43 // pred_check
          %p661 = pneg %p107
        $region46: #{tpu_custom_call.1} parent=43 // pred_check_branch
          %663 = sbr.rel (%p661) target = $region48
        $region47: #{tpu_custom_call.1} parent=43 // pred_region
          %s664 = sand.u32 %s92, 1
          %s665 = scalar_lea.sflag [#allocation4], %s664
          %s666 = sand.u32 %s92, 1
          %s667 = smul.addr %s666, 360
          %s668 = scalar_lea.vmem [#allocation7], %s667
          %669 = dma.done %s665, 5760
        $region48: #{tpu_custom_call.1} parent=43 // pred_fallthru
          _
      $region44: #{tpu_custom_call.1} parent=5 // pred_fallthru
        _
    $region6: #{tpu_custom_call.1} parent=1 // loop_footer
      %s19 = sadd.s32 1, %s15
    $region7: #{tpu_custom_call.1} parent=1 // loop_footer_branch
      %14 = sbr.rel target = $region3
    $region8: #{tpu_custom_call.1} parent=1 // loop_exit
      _
    %670 = vsyncpa [#allocation3], 1
    %s671 = scalar_lea.sflag [#allocation3], 1
    %672 = vsyncpa %s671, 1
    %673 = vsyncpa [#allocation4], 1
    %s674 = scalar_lea.sflag [#allocation4], 1
    %675 = vsyncpa %s674, 1
    %676 = vsyncpa [#allocation5], 1
    %s677 = scalar_lea.sflag [#allocation5], 1
    %678 = vsyncpa %s677, 1

</llo_original>
